<compile_context>
chip_gen: v7x
topology: tpu7x:2x2x1
jax: 0.10.0
libtpu: 0.0.40
codegen_flags: <defaults>
</compile_context>

<pallas_src>
import math
import jax
import jax.numpy as jnp
from jax import lax
from jax.experimental import pallas as pl
from jax.experimental.pallas import tpu as pltpu


def _round_up(x, m):
    return (x + m - 1) // m * m


# ----------------------------------------------------------------------------- helpers
_BUFFERED1_OK = None


def _probe_kernel(x_ref, o_ref):
    o_ref[...] = x_ref[...]


def _buffered1_supported():
    """One-time cached probe: does this build accept pipeline_mode=pl.Buffered(1)?"""
    global _BUFFERED1_OK
    if _BUFFERED1_OK is not None:
        return _BUFFERED1_OK
    if not hasattr(pl, "Buffered"):
        _BUFFERED1_OK = False
        return False
    try:
        x = jnp.zeros((8, 128), jnp.float32)
        out = pl.pallas_call(
            _probe_kernel,
            out_shape=jax.ShapeDtypeStruct((8, 128), jnp.float32),
            grid=(1,),
            in_specs=[pl.BlockSpec((8, 128), lambda i: (0, 0),
                                   pipeline_mode=pl.Buffered(1))],
            out_specs=pl.BlockSpec((8, 128), lambda i: (0, 0)),
        )(x)
        jax.block_until_ready(out)
        _BUFFERED1_OK = True
    except Exception:
        _BUFFERED1_OK = False
    return _BUFFERED1_OK


def _vmem_capacity_bytes():
    """Generation-aware VMEM capacity; conservative (v7x 64 MiB) if query fails."""
    try:
        info = pltpu.get_tpu_info()
        cap = getattr(info, "vmem_capacity_bytes", None)
        if cap:
            return int(cap)
    except Exception:
        pass
    return 64 << 20


# ----------------------------------------------------------------------------- kernel
def _make_kernel(approx_gelu):
    def kernel(a_ref, w1_ref, b1_ref, w2_ref, b2_ref, o_ref, ln_ref):
        j = pl.program_id(1)   # out_features tile index (innermost grid axis)

        # Linear1 + GELU + LayerNorm only once per row tile; reused across all j.
        @pl.when(j == 0)
        def _():
            h = jnp.dot(a_ref[...], w1_ref[...],
                        preferred_element_type=jnp.float32) + b1_ref[...]
            if approx_gelu:
                # tanh approximation (EUP slot) -- explicit opt-in, not torch default
                h3 = h * h * h
                h = 0.5 * h * (1.0 + jnp.tanh(0.7978845608028654 * (h + 0.044715 * h3)))
            else:
                # exact erf GELU (torch.nn.GELU() default)
                h = 0.5 * h * (1.0 + lax.erf(h * 0.7071067811865476))

            # One-pass LayerNorm stats: var = E[x^2] - mean^2  (eps = 1e-6, f32)
            inv_n = 1.0 / h.shape[-1]
            mean = jnp.sum(h, axis=-1, keepdims=True) * inv_n
            meansq = jnp.sum(h * h, axis=-1, keepdims=True) * inv_n
            var = jnp.maximum(meansq - mean * mean, 0.0)
            ln = (h - mean) * lax.rsqrt(var + 1e-6)
            # gamma/beta folded into W2/b2 on the host; store matmul-ready operand
            ln_ref[...] = ln.astype(ln_ref.dtype)

        out = jnp.dot(ln_ref[...], w2_ref[...],
                      preferred_element_type=jnp.float32) + b2_ref[...]
        o_ref[...] = out.astype(o_ref.dtype)

    return kernel


# ----------------------------------------------------------------------------- wrapper
def prediction_forward(a, params, b=None, *, tm=256, tn=None,
                       matmul_dtype=None, approx_gelu=False):
    """Forward of `Prediction`: Linear2(LayerNorm(GELU(Linear1(a))))."""
    w1, b1, gamma, beta, w2, b2 = params

    if b is not None:
        # `Prediction.forward` concat branch: plain last-dim concat before the
        # same dense stack (glue op, outside the kernel).
        a = jnp.concatenate([a, b], axis=-1)

    orig_dtype = a.dtype
    lead_shape = a.shape[:-1]
    inp = a.shape[-1]
    hidden = w1.shape[1]
    out_f = w2.shape[1]
    a2d = a.reshape(-1, inp)
    M = a2d.shape[0]

    # ---- host-side prep ------------------------------------------------------
    # Fold the LayerNorm affine into the second linear (exact algebraic rewrite):
    #   (norm*gamma + beta) @ W2 + b2 == norm @ (gamma[:,None]*W2) + (beta@W2 + b2)
    gamma_c = gamma.reshape(hidden, 1).astype(jnp.float32)
    beta_c = beta.reshape(1, hidden).astype(jnp.float32)
    w2f = gamma_c * w2.astype(jnp.float32)
    b2f = beta_c @ w2.astype(jnp.float32) + b2.reshape(1, out_f).astype(jnp.float32)

    # Explicit opt-in fast path: matmul_dtype=jnp.bfloat16 (f32 accumulation kept).
    mm_dtype = jnp.dtype(matmul_dtype) if matmul_dtype is not None else jnp.dtype(orig_dtype)
    mm_sz = mm_dtype.itemsize
    out_sz = jnp.dtype(orig_dtype).itemsize
    row_align = {4: 8, 2: 16, 1: 32}.get(mm_sz, 8)

    # Zero-pad K (inp) to a lane-dense multiple of 128 (exact: zero cols x zero rows).
    inp_p = _round_up(inp, 128)
    out_fp0 = _round_up(out_f, 128)

    # Constant W1/b1: single-buffered if the build supports Buffered(1).
    w_buf = 1 if _buffered1_supported() else 2

    # ---- tile selection ------------------------------------------------------
    tm_eff = max(row_align, min(_round_up(tm, row_align), _round_up(M, row_align)))
    if M > row_align:
        # ensure the "parallel" row axis has >= 2 steps so dual-TC chips use both cores
        tm_eff = min(tm_eff, max(row_align, _round_up(pl.cdiv(M, 2), row_align)))
    tn_eff = _round_up(min(tn, out_fp0) if tn is not None else out_fp0, 128)

    def vmem_need(t_m, t_n):
        act = 2 * t_m * inp_p * mm_sz                       # double-buffered activation tile
        w1b = w_buf * (inp_p * hidden * mm_sz + hidden * 4)  # resident W1/b1
        w2b = 2 * (hidden * t_n * mm_sz + t_n * 4)           # streamed W2/b2 tile
        outb = 2 * t_m * t_n * out_sz                         # double-buffered output tile
        scratch = t_m * hidden * mm_sz                        # persistent LN scratch
        tmp = 3 * t_m * hidden * 4                            # f32 intermediates headroom
        return act + w1b + w2b + outb + scratch + tmp

    capacity = _vmem_capacity_bytes()
    budget = capacity * 3 // 4          # ~96 MiB on v5e/v6e, ~48 MiB on v7x
    while vmem_need(tm_eff, tn_eff) > budget:
        if tn_eff > 512:
            tn_eff = _round_up(tn_eff // 2, 128)
        elif tm_eff > row_align:
            tm_eff = max(row_align, _round_up(tm_eff // 2, row_align))
        elif tn_eff > 128:
            tn_eff = _round_up(tn_eff // 2, 128)
        else:
            break
    # TODO(synk): if even (row_align, 128) tiles + resident W1 overflow VMEM
    # (huge inp*hidden), add a K-axis grid over inp_p as well.

    out_fp = _round_up(out_f, tn_eff)
    Mp = _round_up(M, tm_eff)

    # ---- padding / casting ---------------------------------------------------
    ap = a2d
    if inp_p != inp:
        ap = jnp.pad(ap, ((0, 0), (0, inp_p - inp)))
    if Mp != M:
        ap = jnp.pad(ap, ((0, Mp - M), (0, 0)))
    ap = ap.astype(mm_dtype)

    w1c = w1.astype(jnp.float32)
    if inp_p != inp:
        w1c = jnp.pad(w1c, ((0, inp_p - inp), (0, 0)))
    w1c = w1c.astype(mm_dtype)

    if out_fp != out_f:
        w2f = jnp.pad(w2f, ((0, 0), (0, out_fp - out_f)))
        b2f = jnp.pad(b2f, ((0, 0), (0, out_fp - out_f)))
    w2c = w2f.astype(mm_dtype)
    b1c = b1.reshape(1, hidden).astype(jnp.float32)
    b2c = b2f.astype(jnp.float32)

    grid = (Mp // tm_eff, out_fp // tn_eff)
    need = vmem_need(tm_eff, tn_eff)
    vmem_limit = int(min(capacity * 9 // 10, max(32 << 20, need * 5 // 4)))

    cost = pl.CostEstimate(
        flops=2 * Mp * (inp_p * hidden + hidden * out_fp),
        transcendentals=Mp * hidden,   # erf / tanh
        bytes_accessed=int(ap.size * mm_sz + w1c.size * mm_sz
                           + grid[0] * w2c.size * mm_sz
                           + Mp * out_fp * out_sz),
    )

    const_kw = dict(pipeline_mode=pl.Buffered(1)) if w_buf == 1 else {}

    out = pl.pallas_call(
        _make_kernel(approx_gelu),
        out_shape=jax.ShapeDtypeStruct((Mp, out_fp), orig_dtype),
        grid_spec=pltpu.PrefetchScalarGridSpec(
            num_scalar_prefetch=0,
            grid=grid,
            in_specs=[
                pl.BlockSpec((tm_eff, inp_p), lambda i, j: (i, 0)),              # activations
                pl.BlockSpec((inp_p, hidden), lambda i, j: (0, 0), **const_kw),  # W1 (resident)
                pl.BlockSpec((1, hidden), lambda i, j: (0, 0), **const_kw),      # b1
                pl.BlockSpec((hidden, tn_eff), lambda i, j: (0, j)),             # W2 tile (gamma folded)
                pl.BlockSpec((1, tn_eff), lambda i, j: (0, j)),                  # b2 tile (beta folded)
            ],
            out_specs=pl.BlockSpec((tm_eff, tn_eff), lambda i, j: (i, j)),
            scratch_shapes=[pltpu.VMEM((tm_eff, hidden), mm_dtype)],             # persistent LN tile
        ),
        compiler_params=pltpu.CompilerParams(
            dimension_semantics=("parallel", "arbitrary"),
            vmem_limit_bytes=vmem_limit,
        ),
        cost_estimate=cost,
    )(ap, w1c, b1c, w2c, b2c)

    out = out[:M, :out_f]
    return out.reshape(*lead_shape, out_f)


# ----------------------------------------------------------------------------- test harness
def init_params(key, inp_features, out_features, hidden_size):
    """Deterministic synthetic init mirroring the PyTorch __init__ shapes.

    w1: normal(std=sqrt(2/inp)), b1: zeros (per custom Linear init)
    LN gamma=1, beta=0
    w2/b2: uniform(-1/sqrt(hidden), 1/sqrt(hidden))  (nn.Linear default)
    Weights stored transposed: (in, out).
    """
    k1, k2, k3 = jax.random.split(key, 3)
    w1 = jax.random.normal(k1, (inp_features, hidden_size), jnp.float32) * math.sqrt(2.0 / inp_features)
    b1 = jnp.zeros((1, hidden_size), jnp.float32)
    gamma = jnp.ones((1, hidden_size), jnp.float32)
    beta = jnp.zeros((1, hidden_size), jnp.float32)
    bound = 1.0 / math.sqrt(hidden_size)
    w2 = jax.random.uniform(k2, (hidden_size, out_features), jnp.float32, -bound, bound)
    b2 = jax.random.uniform(k3, (1, out_features), jnp.float32, -bound, bound)
    return (w1, b1, gamma, beta, w2, b2)


def reference_forward(a, params, b=None):
    """Pure-JAX reference of the PyTorch forward (for sanity check)."""
    w1, b1, gamma, beta, w2, b2 = params
    if b is not None:
        a = jnp.concatenate([a, b], axis=-1)
    h = a.astype(jnp.float32) @ w1 + b1
    h = 0.5 * h * (1.0 + lax.erf(h / jnp.sqrt(2.0)))
    mean = jnp.mean(h, axis=-1, keepdims=True)
    var = jnp.mean((h - mean) ** 2, axis=-1, keepdims=True)
    ln = (h - mean) / jnp.sqrt(var + 1e-6) * gamma + beta
    return (ln @ w2 + b2).astype(a.dtype)


if __name__ == "__main__":
    # Small shapes consistent with the module's forward: a is (batch, seq, inp_features).
    batch, seq = 2, 8
    inp_features, hidden_size, out_features = 32, 128, 32

    key = jax.random.PRNGKey(0)
    ka, kb, kp, kp2 = jax.random.split(key, 4)
    a = jax.random.normal(ka, (batch, seq, inp_features), jnp.float32)
    params = init_params(kp, inp_features, out_features, hidden_size)

    # f32 operand path (default): matches the pure-JAX reference tightly.
    out = jax.block_until_ready(prediction_forward(a, params))
    ref = reference_forward(a, params)
    assert out.shape == (batch, seq, out_features)
    assert jnp.allclose(out, ref, atol=2e-4, rtol=2e-4), "mismatch vs reference (f32)"

    # Concat branch (b is not None) with matching feature split.
    a_cat = a[..., : inp_features // 2]
    b_cat = a[..., inp_features // 2:]
    out_cat = jax.block_until_ready(prediction_forward(a_cat, params, b=b_cat))
    assert jnp.allclose(out_cat, ref, atol=2e-4, rtol=2e-4), "mismatch vs reference (concat)"

    # Ragged row count exercises the cdiv/pad path (no M % tm restriction).
    a_odd = a.reshape(-1, inp_features)[:13]
    out_odd = jax.block_until_ready(prediction_forward(a_odd, params))
    ref_odd = reference_forward(a_odd, params)
    assert jnp.allclose(out_odd, ref_odd, atol=2e-4, rtol=2e-4), "mismatch vs reference (ragged M)"

    # bf16 matmul operands (MXU fast path, explicit opt-in); element-wise math stays f32.
    out_bf16 = jax.block_until_ready(
        prediction_forward(a, params, matmul_dtype=jnp.bfloat16))
    assert float(jnp.max(jnp.abs(out_bf16 - ref))) < 0.1, "bf16 path diverged"

    # N-tiled out_features path (forced small tn -> multi-step inner grid axis).
    out_features2 = 300
    params2 = init_params(kp2, inp_features, out_features2, hidden_size)
    out_nt = jax.block_until_ready(prediction_forward(a, params2, tn=128))
    ref_nt = reference_forward(a, params2)
    assert out_nt.shape == (batch, seq, out_features2)
    assert jnp.allclose(out_nt, ref_nt, atol=2e-4, rtol=2e-4), "mismatch vs reference (N-tiled)"

    # tanh-approximate GELU (explicit opt-in, EUP path) -- loose tolerance.
    out_tanh = jax.block_until_ready(prediction_forward(a, params, approx_gelu=True))
    assert float(jnp.max(jnp.abs(out_tanh - ref))) < 0.1, "approx-GELU path diverged"

    print("KERNEL_OK")
</pallas_src>

<mosaic_0001>
module attributes {stable_mosaic.version = 11 : i64} {
  func.func @_probe_kernel(%arg0: i32, %arg1: memref<8x128xf32, #tpu.memory_space<vmem>>, %arg2: memref<8x128xf32, #tpu.memory_space<vmem>>) attributes {dimension_semantics = [#tpu.dimension_semantics<arbitrary>], iteration_bounds = array<i64: 1>, scalar_prefetch = 0 : i64, scratch_operands = 0 : i64, tpu.core_type = #tpu.core_type<tc>, window_params = [{pipeline_mode = #tpu.pipeline_mode<synchronous>, transform_indices = @transform_0, window_bounds = array<i64: 8, 128>}, {pipeline_mode = #tpu.pipeline_mode<synchronous>, transform_indices = @transform_1, window_bounds = array<i64: 8, 128>}]} {
    %c0 = arith.constant 0 : index
    %c0_0 = arith.constant 0 : index
    %0 = vector.load %arg1[%c0, %c0_0] : memref<8x128xf32, #tpu.memory_space<vmem>>, vector<8x128xf32>
    %c0_1 = arith.constant 0 : index
    %c0_2 = arith.constant 0 : index
    %1 = vector.load %arg2[%c0_1, %c0_2] : memref<8x128xf32, #tpu.memory_space<vmem>>, vector<8x128xf32>
    tpu.vector_store %arg2[%c0_1, %c0_2], %0 {strides = array<i32>} : memref<8x128xf32, #tpu.memory_space<vmem>>, vector<8x128xf32>,
    return
  }
  func.func @transform_0(%arg0: i32) -> (i32, i32) {
    %c0_i32 = arith.constant 0 : i32
    %c0_i32_0 = arith.constant 0 : i32
    %c0_i32_1 = arith.constant 0 : i32
    return %c0_i32, %c0_i32_0 : i32, i32
  }
  func.func @transform_1(%arg0: i32) -> (i32, i32) {
    %c0_i32 = arith.constant 0 : i32
    %c0_i32_0 = arith.constant 0 : i32
    %c0_i32_1 = arith.constant 0 : i32
    return %c0_i32, %c0_i32_0 : i32, i32
  }
}

module attributes {stable_mosaic.version = 11 : i64} {
  func.func @kernel(%arg0: i32, %arg1: i32, %arg2: memref<8x128xf32, #tpu.memory_space<vmem>>, %arg3: memref<128x128xf32, #tpu.memory_space<vmem>>, %arg4: memref<1x128xf32, #tpu.memory_space<vmem>>, %arg5: memref<128x128xf32, #tpu.memory_space<vmem>>, %arg6: memref<1x128xf32, #tpu.memory_space<vmem>>, %arg7: memref<8x128xf32, #tpu.memory_space<vmem>>, %arg8: memref<8x128xf32, #tpu.memory_space<vmem>>) attributes {dimension_semantics = [#tpu.dimension_semantics<parallel>, #tpu.dimension_semantics<arbitrary>], iteration_bounds = array<i64: 2, 1>, scalar_prefetch = 0 : i64, scratch_operands = 1 : i64, tpu.core_type = #tpu.core_type<tc>, window_params = [{transform_indices = @transform_0, window_bounds = array<i64: 8, 128>}, {pipeline_mode = #tpu.pipeline_mode<synchronous>, transform_indices = @transform_1, window_bounds = array<i64: 128, 128>}, {pipeline_mode = #tpu.pipeline_mode<synchronous>, transform_indices = @transform_2, window_bounds = array<i64: 1, 128>}, {transform_indices = @transform_3, window_bounds = array<i64: 128, 128>}, {transform_indices = @transform_4, window_bounds = array<i64: 1, 128>}, {transform_indices = @transform_5, window_bounds = array<i64: 8, 128>}]} {
    %c0_i32 = arith.constant 0 : i32
    %0 = arith.cmpi eq, %arg1, %c0_i32 : i32
    %1 = arith.extui %0 : i1 to i32
    %c0_i32_0 = arith.constant 0 : i32
    %2 = arith.cmpi ne, %1, %c0_i32_0 : i32
    scf.if %2 {
      %c0_8 = arith.constant 0 : index
      %c0_9 = arith.constant 0 : index
      %10 = vector.load %arg2[%c0_8, %c0_9] : memref<8x128xf32, #tpu.memory_space<vmem>>, vector<8x128xf32>
      %c0_10 = arith.constant 0 : index
      %c0_11 = arith.constant 0 : index
      %11 = vector.load %arg3[%c0_10, %c0_11] : memref<128x128xf32, #tpu.memory_space<vmem>>, vector<128x128xf32>
      %cst_12 = arith.constant dense<0.000000e+00> : vector<8x128xf32>
      %12 = tpu.matmul %10, %11, %cst_12 {dimension_numbers = #tpu.dot_dimension_numbers<[1], [0], [0], [1], [0, 0, 1, 1], [], []>} : vector<8x128xf32>, vector<128x128xf32>, vector<8x128xf32> -> vector<8x128xf32>
      %c0_13 = arith.constant 0 : index
      %c0_14 = arith.constant 0 : index
      %13 = vector.load %arg4[%c0_13, %c0_14] : memref<1x128xf32, #tpu.memory_space<vmem>>, vector<1x128xf32>
      %14 = vector.broadcast %13 : vector<1x128xf32> to vector<8x128xf32>
      %15 = arith.addf %12, %14 : vector<8x128xf32>
      %cst_15 = arith.constant 5.000000e-01 : f32
      %16 = vector.broadcast %cst_15 : f32 to vector<8x128xf32>
      %17 = arith.mulf %16, %15 : vector<8x128xf32>
      %cst_16 = arith.constant 0.707106769 : f32
      %18 = vector.broadcast %cst_16 : f32 to vector<8x128xf32>
      %19 = arith.mulf %15, %18 : vector<8x128xf32>
      %20 = math.erf %19 : vector<8x128xf32>
      %cst_17 = arith.constant 1.000000e+00 : f32
      %21 = vector.broadcast %cst_17 : f32 to vector<8x128xf32>
      %22 = arith.addf %21, %20 : vector<8x128xf32>
      %23 = arith.mulf %17, %22 : vector<8x128xf32>
      %cst_18 = arith.constant dense<0.000000e+00> : vector<8xf32>
      %24 = vector.multi_reduction <add>, %23, %cst_18 [1] : vector<8x128xf32> to vector<8xf32>
      %25 = vector.shape_cast %24 : vector<8xf32> to vector<8x1xf32>
      %cst_19 = arith.constant 7.812500e-03 : f32
      %26 = vector.broadcast %cst_19 : f32 to vector<8x1xf32>
      %27 = arith.mulf %25, %26 : vector<8x1xf32>
      %28 = arith.mulf %23, %23 : vector<8x128xf32>
      %cst_20 = arith.constant dense<0.000000e+00> : vector<8xf32>
      %29 = vector.multi_reduction <add>, %28, %cst_20 [1] : vector<8x128xf32> to vector<8xf32>
      %30 = vector.shape_cast %29 : vector<8xf32> to vector<8x1xf32>
      %cst_21 = arith.constant 7.812500e-03 : f32
      %31 = vector.broadcast %cst_21 : f32 to vector<8x1xf32>
      %32 = arith.mulf %30, %31 : vector<8x1xf32>
      %33 = arith.mulf %27, %27 : vector<8x1xf32>
      %34 = arith.subf %32, %33 : vector<8x1xf32>
      %cst_22 = arith.constant 0.000000e+00 : f32
      %35 = vector.broadcast %cst_22 : f32 to vector<8x1xf32>
      %36 = arith.maximumf %34, %35 : vector<8x1xf32>
      %37 = vector.broadcast %27 : vector<8x1xf32> to vector<8x128xf32>
      %38 = arith.subf %23, %37 : vector<8x128xf32>
      %cst_23 = arith.constant 9.99999997E-7 : f32
      %39 = vector.broadcast %cst_23 : f32 to vector<8x1xf32>
      %40 = arith.addf %36, %39 : vector<8x1xf32>
      %41 = math.rsqrt %40 : vector<8x1xf32>
      %42 = vector.broadcast %41 : vector<8x1xf32> to vector<8x128xf32>
      %43 = arith.mulf %38, %42 : vector<8x128xf32>
      %c0_24 = arith.constant 0 : index
      %c0_25 = arith.constant 0 : index
      %44 = vector.load %arg8[%c0_24, %c0_25] : memref<8x128xf32, #tpu.memory_space<vmem>>, vector<8x128xf32>
      tpu.vector_store %arg8[%c0_24, %c0_25], %43 {strides = array<i32>} : memref<8x128xf32, #tpu.memory_space<vmem>>, vector<8x128xf32>,
    } else {
    }
    %c0 = arith.constant 0 : index
    %c0_1 = arith.constant 0 : index
    %3 = vector.load %arg8[%c0, %c0_1] : memref<8x128xf32, #tpu.memory_space<vmem>>, vector<8x128xf32>
    %c0_2 = arith.constant 0 : index
    %c0_3 = arith.constant 0 : index
    %4 = vector.load %arg5[%c0_2, %c0_3] : memref<128x128xf32, #tpu.memory_space<vmem>>, vector<128x128xf32>
    %cst = arith.constant dense<0.000000e+00> : vector<8x128xf32>
    %5 = tpu.matmul %3, %4, %cst {dimension_numbers = #tpu.dot_dimension_numbers<[1], [0], [0], [1], [0, 0, 1, 1], [], []>} : vector<8x128xf32>, vector<128x128xf32>, vector<8x128xf32> -> vector<8x128xf32>
    %c0_4 = arith.constant 0 : index
    %c0_5 = arith.constant 0 : index
    %6 = vector.load %arg6[%c0_4, %c0_5] : memref<1x128xf32, #tpu.memory_space<vmem>>, vector<1x128xf32>
    %7 = vector.broadcast %6 : vector<1x128xf32> to vector<8x128xf32>
    %8 = arith.addf %5, %7 : vector<8x128xf32>
    %c0_6 = arith.constant 0 : index
    %c0_7 = arith.constant 0 : index
    %9 = vector.load %arg7[%c0_6, %c0_7] : memref<8x128xf32, #tpu.memory_space<vmem>>, vector<8x128xf32>
    tpu.vector_store %arg7[%c0_6, %c0_7], %8 {strides = array<i32>} : memref<8x128xf32, #tpu.memory_space<vmem>>, vector<8x128xf32>,
    return
  }
  func.func @transform_0(%arg0: i32, %arg1: i32) -> (i32, i32) {
    %c0_i32 = arith.constant 0 : i32
    %c0_i32_0 = arith.constant 0 : i32
    return %arg0, %c0_i32 : i32, i32
  }
  func.func @transform_1(%arg0: i32, %arg1: i32) -> (i32, i32) {
    %c0_i32 = arith.constant 0 : i32
    %c0_i32_0 = arith.constant 0 : i32
    %c0_i32_1 = arith.constant 0 : i32
    return %c0_i32, %c0_i32_0 : i32, i32
  }
  func.func @transform_2(%arg0: i32, %arg1: i32) -> (i32, i32) {
    %c0_i32 = arith.constant 0 : i32
    %c0_i32_0 = arith.constant 0 : i32
    %c0_i32_1 = arith.constant 0 : i32
    return %c0_i32, %c0_i32_0 : i32, i32
  }
  func.func @transform_3(%arg0: i32, %arg1: i32) -> (i32, i32) {
    %c0_i32 = arith.constant 0 : i32
    %c0_i32_0 = arith.constant 0 : i32
    return %c0_i32, %arg1 : i32, i32
  }
  func.func @transform_4(%arg0: i32, %arg1: i32) -> (i32, i32) {
    %c0_i32 = arith.constant 0 : i32
    %c0_i32_0 = arith.constant 0 : i32
    return %c0_i32, %arg1 : i32, i32
  }
  func.func @transform_5(%arg0: i32, %arg1: i32) -> (i32, i32) {
    %c0_i32 = arith.constant 0 : i32
    return %arg0, %arg1 : i32, i32
  }
}

</mosaic_0001>

<llo_original>
// kernel: tpu_custom_call.1
$region0: #{tpu_custom_call.1}
  #allocation0 [shape = 'u32[]', space=smem, size = 0x4, offset = 0x4, fixed_abs, tag = 'smem constant byte address 0x4 - core index']
  #allocation1 [shape = 'u32[144,128]{1,0:T(1,128)}', space=vmem, size = 0x12000, scoped, tag = 'internal scratch']
  %s0 = inlined_call_operand.hbm [shape: f32[8,128], index: 0, kind: input, shape index: {}]
  %s1 = inlined_call_operand.hbm [shape: f32[8,128], index: 1, kind: output, shape index: {}]
  %s2 = sld [smem:[#allocation0]]
  $region18: #{tpu_custom_call.1} parent=0
    _
  %s4 = ssub.s32 1, %s2
  %s5 = scalar_select 0, %s4, %s2
  $region1: #{tpu_custom_call.1} parent=0
    #allocation2 [shape = 'u8[4096]{0}', space=vmem, size = 0x1000, scoped, tag = 'input window, operand 0, single buffered']
    #allocation3 [shape = 's32[1]{0}', space=sflag, size = 0x4, scoped, tag = 'scoped memory for tpu_custom_call.1']
    #allocation4 [shape = 's32[1]{0}', space=sflag, size = 0x4, scoped, tag = 'scoped memory for tpu_custom_call.1']
    #allocation5 [shape = 'u8[4096]{0}', space=vmem, size = 0x1000, scoped, tag = 'output window, operand 0, single buffered']
    %6 = vsyncpa [#allocation3], 0
    %7 = vsyncpa [#allocation4], 0
    // Predicated region
    $region2: #{tpu_custom_call.1} parent=1 // pred_check
      _
    $region3: #{tpu_custom_call.1} parent=1 // pred_check_branch
      %9 = sbr.rel (0) target = $region5
    $region4: #{tpu_custom_call.1} parent=1 // pred_region
      %s11 = ssub.s32 128, 128
      %12 = vsyncadd [#allocation3], %s11
      %s14 = sshll.u32 [#allocation2], 4
      %s15 = int_to_ptr.vmem [resolvable:$true] %s14
      %17 = dma.hbm_to_vmem [thread:$0]  %s0, 128, %s15, [#allocation3]
    $region5: #{tpu_custom_call.1} parent=1 // pred_fallthru
      _
    // Predicated region
    $region6: #{tpu_custom_call.1} parent=1 // pred_check
      _
    $region7: #{tpu_custom_call.1} parent=1 // pred_check_branch
      %19 = sbr.rel (0) target = $region9
    $region8: #{tpu_custom_call.1} parent=1 // pred_region
      %20 = dma.done [#allocation3], 128
    $region9: #{tpu_custom_call.1} parent=1 // pred_fallthru
      _
    %v21 = vld [vmem:[#allocation2] sm:$0xff]
    %22 = vst [vmem:[#allocation5] sm:$0xff] %v21
    // Predicated region
    $region10: #{tpu_custom_call.1} parent=1 // pred_check
      _
    $region11: #{tpu_custom_call.1} parent=1 // pred_check_branch
      %24 = sbr.rel (0) target = $region13
    $region12: #{tpu_custom_call.1} parent=1 // pred_region
      %s26 = ssub.s32 128, 128
      %27 = vsyncadd [#allocation4], %s26
      %s29 = sshll.u32 [#allocation5], 4
      %s30 = int_to_ptr.vmem [resolvable:$true] %s29
      %32 = dma.vmem_to_hbm [thread:$0]  %s30, 128, %s1, [#allocation4]
    $region13: #{tpu_custom_call.1} parent=1 // pred_fallthru
      _
    // Predicated region
    $region14: #{tpu_custom_call.1} parent=1 // pred_check
      _
    $region15: #{tpu_custom_call.1} parent=1 // pred_check_branch
      %34 = sbr.rel (0) target = $region17
    $region16: #{tpu_custom_call.1} parent=1 // pred_region
      %35 = dma.done [#allocation4], 128
    $region17: #{tpu_custom_call.1} parent=1 // pred_fallthru
      _
    %36 = vsyncpa [#allocation3], 1
    %37 = vsyncpa [#allocation4], 1

// kernel: tpu_custom_call.1
$region0: #{tpu_custom_call.1}
  #allocation0 [shape = 'u32[]', space=smem, size = 0x4, offset = 0x4, fixed_abs, tag = 'smem constant byte address 0x4 - core index']
  #allocation1 [shape = 'u32[144,128]{1,0:T(1,128)}', space=vmem, size = 0x12000, scoped, tag = 'internal scratch']
  #allocation2 [shape = 'f32[8,128]{1,0:T(8,128)}', space=vmem, size = 0x1000, scoped, tag = 'scratch operand']
  %s0 = inlined_call_operand.hbm [shape: f32[16,128], index: 0, kind: input, shape index: {}]
  %s1 = inlined_call_operand.hbm [shape: f32[128,128], index: 1, kind: input, shape index: {}]
  %s2 = inlined_call_operand.vmem [shape: f32[1,128], index: 2, kind: input, shape index: {}]
  %s3 = inlined_call_operand.hbm [shape: f32[128,128], index: 3, kind: input, shape index: {}]
  %s4 = inlined_call_operand.vmem [shape: f32[1,128], index: 4, kind: input, shape index: {}]
  %s5 = inlined_call_operand.hbm [shape: f32[16,128], index: 5, kind: output, shape index: {}]
  %s6 = sld [smem:[#allocation0]]
  $region69: #{tpu_custom_call.1} parent=0
    _
  %s8 = ssub.s32 1, %s6
  %s9 = scalar_select 0, %s8, %s6
  $region1: #{tpu_custom_call.1} parent=0
    #allocation3 [shape = 'u8[8192]{0}', space=vmem, size = 0x2000, scoped, tag = 'input window, operand 0']
    #allocation4 [shape = 's32[2]{0}', space=sflag, size = 0x8, scoped, tag = 'scoped memory for tpu_custom_call.1']
    #allocation5 [shape = 's32[2]{0}', space=sflag, size = 0x8, scoped, tag = 'scoped memory for tpu_custom_call.1']
    #allocation6 [shape = 'u8[65536]{0}', space=vmem, size = 0x10000, scoped, tag = 'input window, operand 1, single buffered']
    #allocation7 [shape = 's32[1]{0}', space=sflag, size = 0x4, scoped, tag = 'scoped memory for tpu_custom_call.1']
    #allocation8 [shape = 'u8[65536]{0}', space=vmem, size = 0x10000, scoped, tag = 'input window, operand 3, single buffered']
    #allocation9 [shape = 'u8[8192]{0}', space=vmem, size = 0x2000, scoped, tag = 'output window, operand 0']
    %10 = vsyncpa [#allocation4], 0
    %s11 = scalar_lea.sflag [#allocation4], 1
    %12 = vsyncpa %s11, 0
    %13 = vsyncpa [#allocation7], 0
    %14 = vsyncpa [#allocation5], 0
    %s15 = scalar_lea.sflag [#allocation5], 1
    %16 = vsyncpa %s15, 0
    loop: start=0, step=1, limit=4
    $region2: #{tpu_custom_call.1} parent=1 // loop_pre_header
      _
    $region3: #{tpu_custom_call.1} parent=1 // loop_header
      %s18 = sphi 0, %s22
      %p19 = scmp.ge.s32.totalorder %s18, 4
      %s25 = sphi 0, %s37
      %s26 = sphi 0, %s33
      %s27 = sphi 0, %s25
      %s28 = sphi 0, %s26
      %s29 = sphi 0, %s27
      %s30 = sphi 0, %s28
      %s40 = sphi 0, %s42
      %s43 = sphi 0, %s40
      %s44 = sphi 0, %s43
      %s60 = sphi 0, %s44
      %s64 = sphi 0, %s64
      %s66 = sphi 0, %s64
      %s67 = sphi 0, %s66
      %s81 = sphi 0, %s67
      %s85 = sphi 0, %s85
      %s87 = sphi 0, %s85
      %s88 = sphi 0, %s87
      %s102 = sphi 0, %s88
      %s108 = sphi 0, %s110
      %s111 = sphi 0, %s108
      %s112 = sphi 0, %s111
      %s128 = sphi 0, %s112
      %s134 = sphi 0, %s136
      %s137 = sphi 0, %s134
      %s138 = sphi 0, %s137
      %s154 = sphi 0, %s138
      %s162 = sphi 0, %s164
      %s165 = sphi 0, %s162
      %s166 = sphi 0, %s165
      %s182 = sphi 0, %s166
    $region4: #{tpu_custom_call.1} parent=1 // loop_header_branch
      %21 = sbr.rel (%p19) target = $region8
    $region5: #{tpu_custom_call.1} parent=1 // loop_body
      %s23 = ssub.s32 %s18, 1
      %s24 = ssub.s32 %s18, 2
      %s31 = sadd.s32 1, %s26
      %p32 = scmp.ge.s32.totalorder %s31, 1
      %s33 = scalar_select %p32, 0, %s31
      %s34 = sadd.s32 1, %s25
      %s35 = scalar_select %p32, %s34, %s25
      %p36 = scmp.ge.s32.totalorder %s35, 2
      %s37 = scalar_select %p36, 0, %s35
      %s38 = ssub.s32 %s25, %s37
      %p39 = scmp.eq.s32.totalorder %s38, 0
      %s41 = sadd.s32 %s40, 1
      %s42 = scalar_select %p39, %s40, %s41
      %p45 = pneg %p39
      %p46 = scmp.eq.s32.totalorder %s18, 1
      %p47 = por %p45, %p46
      %p48 = scmp.ne.s32.totalorder %s40, %s43
      %p49 = scmp.eq.s32.totalorder %s18, 0
      %p50 = por %p48, %p49
      %p51 = scmp.ne.s32.totalorder %s40, %s43
      %p52 = scmp.eq.s32.totalorder %s23, 1
      %p53 = por %p51, %p52
      %p54 = scmp.ne.s32.totalorder %s43, %s44
      %p55 = scmp.eq.s32.totalorder %s23, 0
      %p56 = por %p54, %p55
      %p57 = scmp.ne.s32.totalorder %s43, %s44
      %p58 = scmp.eq.s32.totalorder %s24, 1
      %p59 = por %p57, %p58
      %p61 = scmp.ne.s32.totalorder %s44, %s60
      %p62 = scmp.eq.s32.totalorder %s24, 0
      %p63 = por %p61, %p62
      %s65 = sadd.s32 %s64, 1
      %p68 = scmp.eq.s32.totalorder %s18, 1
      %p69 = scmp.ne.s32.totalorder %s64, %s66
      %p70 = scmp.eq.s32.totalorder %s18, 0
      %p71 = por %p69, %p70
      %p72 = scmp.ne.s32.totalorder %s64, %s66
      %p73 = scmp.eq.s32.totalorder %s23, 1
      %p74 = por %p72, %p73
      %p75 = scmp.ne.s32.totalorder %s66, %s67
      %p76 = scmp.eq.s32.totalorder %s23, 0
      %p77 = por %p75, %p76
      %p78 = scmp.ne.s32.totalorder %s66, %s67
      %p79 = scmp.eq.s32.totalorder %s24, 1
      %p80 = por %p78, %p79
      %p82 = scmp.ne.s32.totalorder %s67, %s81
      %p83 = scmp.eq.s32.totalorder %s24, 0
      %p84 = por %p82, %p83
      %s86 = sadd.s32 %s85, 1
      %p89 = scmp.eq.s32.totalorder %s18, 1
      %p90 = scmp.ne.s32.totalorder %s85, %s87
      %p91 = scmp.eq.s32.totalorder %s18, 0
      %p92 = por %p90, %p91
      %p93 = scmp.ne.s32.totalorder %s85, %s87
      %p94 = scmp.eq.s32.totalorder %s23, 1
      %p95 = por %p93, %p94
      %p96 = scmp.ne.s32.totalorder %s87, %s88
      %p97 = scmp.eq.s32.totalorder %s23, 0
      %p98 = por %p96, %p97
      %p99 = scmp.ne.s32.totalorder %s87, %s88
      %p100 = scmp.eq.s32.totalorder %s24, 1
      %p101 = por %p99, %p100
      %p103 = scmp.ne.s32.totalorder %s88, %s102
      %p104 = scmp.eq.s32.totalorder %s24, 0
      %p105 = por %p103, %p104
      %s106 = ssub.s32 %s26, %s33
      %p107 = scmp.eq.s32.totalorder %s106, 0
      %s109 = sadd.s32 %s108, 1
      %s110 = scalar_select %p107, %s108, %s109
      %p113 = pneg %p107
      %p114 = scmp.eq.s32.totalorder %s18, 1
      %p115 = por %p113, %p114
      %p116 = scmp.ne.s32.totalorder %s108, %s111
      %p117 = scmp.eq.s32.totalorder %s18, 0
      %p118 = por %p116, %p117
      %p119 = scmp.ne.s32.totalorder %s108, %s111
      %p120 = scmp.eq.s32.totalorder %s23, 1
      %p121 = por %p119, %p120
      %p122 = scmp.ne.s32.totalorder %s111, %s112
      %p123 = scmp.eq.s32.totalorder %s23, 0
      %p124 = por %p122, %p123
      %p125 = scmp.ne.s32.totalorder %s111, %s112
      %p126 = scmp.eq.s32.totalorder %s24, 1
      %p127 = por %p125, %p126
      %p129 = scmp.ne.s32.totalorder %s112, %s128
      %p130 = scmp.eq.s32.totalorder %s24, 0
      %p131 = por %p129, %p130
      %s132 = ssub.s32 %s26, %s33
      %p133 = scmp.eq.s32.totalorder %s132, 0
      %s135 = sadd.s32 %s134, 1
      %s136 = scalar_select %p133, %s134, %s135
      %p139 = pneg %p133
      %p140 = scmp.eq.s32.totalorder %s18, 1
      %p141 = por %p139, %p140
      %p142 = scmp.ne.s32.totalorder %s134, %s137
      %p143 = scmp.eq.s32.totalorder %s18, 0
      %p144 = por %p142, %p143
      %p145 = scmp.ne.s32.totalorder %s134, %s137
      %p146 = scmp.eq.s32.totalorder %s23, 1
      %p147 = por %p145, %p146
      %p148 = scmp.ne.s32.totalorder %s137, %s138
      %p149 = scmp.eq.s32.totalorder %s23, 0
      %p150 = por %p148, %p149
      %p151 = scmp.ne.s32.totalorder %s137, %s138
      %p152 = scmp.eq.s32.totalorder %s24, 1
      %p153 = por %p151, %p152
      %p155 = scmp.ne.s32.totalorder %s138, %s154
      %p156 = scmp.eq.s32.totalorder %s24, 0
      %p157 = por %p155, %p156
      %s158 = ssub.s32 %s25, %s37
      %s159 = ssub.s32 %s26, %s33
      %s160 = sor.u32 %s158, %s159
      %p161 = scmp.eq.s32.totalorder %s160, 0
      %s163 = sadd.s32 %s162, 1
      %s164 = scalar_select %p161, %s162, %s163
      %p167 = pneg %p161
      %p168 = scmp.eq.s32.totalorder %s18, 1
      %p169 = por %p167, %p168
      %p170 = scmp.ne.s32.totalorder %s162, %s165
      %p171 = scmp.eq.s32.totalorder %s18, 0
      %p172 = por %p170, %p171
      %p173 = scmp.ne.s32.totalorder %s162, %s165
      %p174 = scmp.eq.s32.totalorder %s23, 1
      %p175 = por %p173, %p174
      %p176 = scmp.ne.s32.totalorder %s165, %s166
      %p177 = scmp.eq.s32.totalorder %s23, 0
      %p178 = por %p176, %p177
      %p179 = scmp.ne.s32.totalorder %s165, %s166
      %p180 = scmp.eq.s32.totalorder %s24, 1
      %p181 = por %p179, %p180
      %p183 = scmp.ne.s32.totalorder %s166, %s182
      %p184 = scmp.eq.s32.totalorder %s24, 0
      %p185 = por %p183, %p184
      %p186 = scmp.le.s32.totalorder 1, %s18
      %p187 = scmp.lt.s32.totalorder %s18, 3
      %p188 = pnand %p186, %p187
      %p189 = pneg %p188
      // Predicated region
      $region9: #{tpu_custom_call.1} parent=5 // pred_check
        _
      $region10: #{tpu_custom_call.1} parent=5 // pred_check_branch
        %191 = sbr.rel (%p188) target = $region12
      $region11: #{tpu_custom_call.1} parent=5 // pred_region
        %s192 = ssub.s32 %s18, 1
        // Predicated region
        $region13: #{tpu_custom_call.1} parent=11 // pred_check
          %p193 = pneg %p77
        $region14: #{tpu_custom_call.1} parent=11 // pred_check_branch
          %195 = sbr.rel (%p193) target = $region16
        $region15: #{tpu_custom_call.1} parent=11 // pred_region
          %s197 = ssub.s32 2048, 2048
          %198 = vsyncadd [#allocation7], %s197
          %s199 = sshll.u32 [#allocation6], 4
          %s200 = int_to_ptr.vmem [resolvable:$true] %s199
          %205 = dma.hbm_to_vmem [thread:$0]  %s1, 2048, %s200, [#allocation7], 128, 128, 8
        $region16: #{tpu_custom_call.1} parent=11 // pred_fallthru
          _
        // Predicated region
        $region17: #{tpu_custom_call.1} parent=11 // pred_check
          %p206 = pneg %p98
        $region18: #{tpu_custom_call.1} parent=11 // pred_check_branch
          %208 = sbr.rel (%p206) target = $region20
        $region19: #{tpu_custom_call.1} parent=11 // pred_region
          _
        $region20: #{tpu_custom_call.1} parent=11 // pred_fallthru
          _
        // Predicated region
        $region21: #{tpu_custom_call.1} parent=11 // pred_check
          %p209 = pneg %p124
        $region22: #{tpu_custom_call.1} parent=11 // pred_check_branch
          %211 = sbr.rel (%p209) target = $region24
        $region23: #{tpu_custom_call.1} parent=11 // pred_region
          %s213 = ssub.s32 2048, 2048
          %214 = vsyncadd [#allocation7], %s213
          %s215 = smul.addr %s28, 128
          %s216 = scalar_lea.hbm %s3, %s215
          %s217 = sshll.u32 [#allocation8], 4
          %s218 = int_to_ptr.vmem [resolvable:$true] %s217
          %223 = dma.hbm_to_vmem [thread:$0]  %s216, 2048, %s218, [#allocation7], 128, 128, 8
        $region24: #{tpu_custom_call.1} parent=11 // pred_fallthru
          _
        // Predicated region
        $region25: #{tpu_custom_call.1} parent=11 // pred_check
          %p224 = pneg %p150
        $region26: #{tpu_custom_call.1} parent=11 // pred_check_branch
          %226 = sbr.rel (%p224) target = $region28
        $region27: #{tpu_custom_call.1} parent=11 // pred_region
          %p227 = scmp.lt.s32.totalorder %s28, 0
          %s228 = scalar_select %p227, %s28, 0
          %s229 = scalar_lea.vmem %s4, %s228
        $region28: #{tpu_custom_call.1} parent=11 // pred_fallthru
          _
      $region12: #{tpu_custom_call.1} parent=5 // pred_fallthru
        _
      %p230 = scmp.lt.s32.totalorder %s18, 2
      // Predicated region
      $region29: #{tpu_custom_call.1} parent=5 // pred_check
        %p231 = pneg %p230
      $region30: #{tpu_custom_call.1} parent=5 // pred_check_branch
        %233 = sbr.rel (%p231) target = $region32
      $region31: #{tpu_custom_call.1} parent=5 // pred_region
        // Predicated region
        $region33: #{tpu_custom_call.1} parent=31 // pred_check
          %p234 = pneg %p50
        $region34: #{tpu_custom_call.1} parent=31 // pred_check_branch
          %236 = sbr.rel (%p234) target = $region36
        $region35: #{tpu_custom_call.1} parent=31 // pred_region
          %s237 = sand.u32 %s40, 1
          %s238 = scalar_lea.sflag [#allocation4], %s237
          %s239 = sand.u32 %s40, 1
          %s240 = smul.addr %s239, 8
          %s241 = scalar_lea.vmem [#allocation3], %s240
          %s243 = ssub.s32 128, 128
          %244 = vsyncadd %s238, %s243
          %s245 = smul.addr %s25, 128
          %s246 = scalar_lea.hbm %s0, %s245
          %s248 = sshll.u32 %s241, 4
          %s249 = int_to_ptr.vmem [resolvable:$true] %s248
          %251 = dma.hbm_to_vmem [thread:$0]  %s246, 128, %s249, %s238
        $region36: #{tpu_custom_call.1} parent=31 // pred_fallthru
          _
      $region32: #{tpu_custom_call.1} parent=5 // pred_fallthru
        _
      %p252 = scmp.le.s32.totalorder 1, %s18
      %p253 = scmp.lt.s32.totalorder %s18, 3
      %p254 = pnand %p252, %p253
      %p255 = pneg %p254
      // Predicated region
      $region37: #{tpu_custom_call.1} parent=5 // pred_check
        _
      $region38: #{tpu_custom_call.1} parent=5 // pred_check_branch
        %257 = sbr.rel (%p254) target = $region40
      $region39: #{tpu_custom_call.1} parent=5 // pred_region
        %s258 = ssub.s32 %s18, 1
        %s259 = sand.u32 %s43, 1
        %s260 = scalar_lea.sflag [#allocation4], %s259
        %s261 = sand.u32 %s43, 1
        %s262 = smul.addr %s261, 8
        %s263 = scalar_lea.vmem [#allocation3], %s262
        // Predicated region
        $region41: #{tpu_custom_call.1} parent=39 // pred_check
          %p264 = pneg %p56
        $region42: #{tpu_custom_call.1} parent=39 // pred_check_branch
          %266 = sbr.rel (%p264) target = $region44
        $region43: #{tpu_custom_call.1} parent=39 // pred_region
          %267 = dma.done %s260, 128
        $region44: #{tpu_custom_call.1} parent=39 // pred_fallthru
          _
        // Predicated region
        $region45: #{tpu_custom_call.1} parent=39 // pred_check
          %p268 = pneg %p77
        $region46: #{tpu_custom_call.1} parent=39 // pred_check_branch
          %270 = sbr.rel (%p268) target = $region48
        $region47: #{tpu_custom_call.1} parent=39 // pred_region
          %271 = dma.done [#allocation7], 2048
        $region48: #{tpu_custom_call.1} parent=39 // pred_fallthru
          _
        // Predicated region
        $region49: #{tpu_custom_call.1} parent=39 // pred_check
          %p272 = pneg %p124
        $region50: #{tpu_custom_call.1} parent=39 // pred_check_branch
          %274 = sbr.rel (%p272) target = $region52
        $region51: #{tpu_custom_call.1} parent=39 // pred_region
          %275 = dma.done [#allocation7], 2048
        $region52: #{tpu_custom_call.1} parent=39 // pred_fallthru
          _
        %s276 = sand.u32 %s43, 1
        %s277 = scalar_lea.sflag [#allocation4], %s276
        %s278 = sand.u32 %s43, 1
        %s279 = smul.addr %s278, 8
        %s280 = scalar_lea.vmem [#allocation3], %s279
        %p281 = pneg %p56
        %p282 = pneg %p53
        %p283 = pneg %p77
        %p284 = pneg %p74
        %p285 = pneg %p98
        %p286 = pneg %p95
        %p287 = pneg %p124
        %p288 = pneg %p121
        %p289 = scmp.lt.s32.totalorder %s28, 0
        %s290 = scalar_select %p289, %s28, 0
        %s291 = scalar_lea.vmem %s4, %s290
        %p292 = pneg %p150
        %p293 = pneg %p147
        %p294 = pneg %p178
        %p295 = pneg %p175
        %s296 = sand.u32 %s165, 1
        %s297 = scalar_lea.sflag [#allocation5], %s296
        %s298 = sand.u32 %s165, 1
        %s299 = smul.addr %s298, 8
        %s300 = scalar_lea.vmem [#allocation9], %s299
        %p301 = scmp.lt.s32.totalorder %s28, 0
        %s302 = scalar_select %p301, %s28, 0
        %s303 = scalar_lea.vmem %s4, %s302
        %p304 = scmp.eq.s32.totalorder %s28, 0
        // Predicated region
        $region53: #{tpu_custom_call.1} parent=39 // pred_check
          %p305 = pneg %p304
        $region54: #{tpu_custom_call.1} parent=39 // pred_check_branch
          %307 = sbr.rel (%p305) target = $region56
        $region55: #{tpu_custom_call.1} parent=39 // pred_region
          %v308 = vld [vmem:[%s263] sm:$0xff]
          %v309 = vld [vmem:[#allocation6] sm:$0xff]
          %v310 = vld [vmem:[#allocation6 + $0x8] sm:$0xff]
          %v311 = vld [vmem:[#allocation6 + $0x10] sm:$0xff]
          %v312 = vld [vmem:[#allocation6 + $0x18] sm:$0xff]
          %v313 = vld [vmem:[#allocation6 + $0x20] sm:$0xff]
          %v314 = vld [vmem:[#allocation6 + $0x28] sm:$0xff]
          %v315 = vld [vmem:[#allocation6 + $0x30] sm:$0xff]
          %v316 = vld [vmem:[#allocation6 + $0x38] sm:$0xff]
          %v317 = vld [vmem:[#allocation6 + $0x40] sm:$0xff]
          %v318 = vld [vmem:[#allocation6 + $0x48] sm:$0xff]
          %v319 = vld [vmem:[#allocation6 + $0x50] sm:$0xff]
          %v320 = vld [vmem:[#allocation6 + $0x58] sm:$0xff]
          %v321 = vld [vmem:[#allocation6 + $0x60] sm:$0xff]
          %v322 = vld [vmem:[#allocation6 + $0x68] sm:$0xff]
          %v323 = vld [vmem:[#allocation6 + $0x70] sm:$0xff]
          %v324 = vld [vmem:[#allocation6 + $0x78] sm:$0xff]
          %v325 = vld [vmem:[%s2] sm:$0x1]
          %v327 = vlaneseq
          %v328 = vshrl.u32 %v327, 7
          %v329 = vsub.s32 0, %v328
          %v330 = vrot.slane %v325, %v329
          %332 = vmatprep.subr.mxu0 0.0
          %333 = vmatpush1.msra.mxu0 %v309
          %334 = vmatprep.subr.mxu0 0.0
          %335 = vmatpush1.msra.mxu0 %v310
          %336 = vmatprep.subr.mxu0 0.0
          %337 = vmatpush1.msra.mxu0 %v311
          %338 = vmatprep.subr.mxu0 0.0
          %339 = vmatpush1.msra.mxu0 %v312
          %340 = vmatprep.subr.mxu0 0.0
          %341 = vmatpush1.msra.mxu0 %v313
          %342 = vmatprep.subr.mxu0 0.0
          %343 = vmatpush1.msra.mxu0 %v314
          %344 = vmatprep.subr.mxu0 0.0
          %345 = vmatpush1.msra.mxu0 %v315
          %346 = vmatprep.subr.mxu0 0.0
          %347 = vmatpush1.msra.mxu0 %v316
          %348 = vmatprep.subr.mxu0 0.0
          %349 = vmatpush1.msra.mxu0 %v317
          %350 = vmatprep.subr.mxu0 0.0
          %351 = vmatpush1.msra.mxu0 %v318
          %352 = vmatprep.subr.mxu0 0.0
          %353 = vmatpush1.msra.mxu0 %v319
          %354 = vmatprep.subr.mxu0 0.0
          %355 = vmatpush1.msra.mxu0 %v320
          %356 = vmatprep.subr.mxu0 0.0
          %357 = vmatpush1.msra.mxu0 %v321
          %358 = vmatprep.subr.mxu0 0.0
          %359 = vmatpush1.msra.mxu0 %v322
          %360 = vmatprep.subr.mxu0 0.0
          %361 = vmatpush1.msra.mxu0 %v323
          %362 = vmatprep.subr.mxu0 0.0
          %363 = vmatpush1.msra.mxu0 %v324
          %364 = vmatprep.subr.mxu0 0.0
          %365 = vmatpush1.msra.mxu0 0.0
          %366 = vmatprep.subr.mxu0 0.0
          %367 = vmatpush1.msra.mxu0 0.0
          %368 = vmatprep.subr.mxu0 0.0
          %369 = vmatpush1.msra.mxu0 0.0
          %370 = vmatprep.subr.mxu0 0.0
          %371 = vmatpush1.msra.mxu0 0.0
          %372 = vmatprep.subr.mxu0 0.0
          %373 = vmatpush1.msra.mxu0 0.0
          %374 = vmatprep.subr.mxu0 0.0
          %375 = vmatpush1.msra.mxu0 0.0
          %376 = vmatprep.subr.mxu0 0.0
          %377 = vmatpush1.msra.mxu0 0.0
          %378 = vmatprep.subr.mxu0 0.0
          %379 = vmatpush1.msra.mxu0 0.0
          %380 = vmatprep.subr.mxu0 0.0
          %381 = vmatpush1.msra.mxu0 0.0
          %382 = vmatprep.subr.mxu0 0.0
          %383 = vmatpush1.msra.mxu0 0.0
          %384 = vmatprep.subr.mxu0 0.0
          %385 = vmatpush1.msra.mxu0 0.0
          %386 = vmatprep.subr.mxu0 0.0
          %387 = vmatpush1.msra.mxu0 0.0
          %388 = vmatprep.subr.mxu0 0.0
          %389 = vmatpush1.msra.mxu0 0.0
          %390 = vmatprep.subr.mxu0 0.0
          %391 = vmatpush1.msra.mxu0 0.0
          %392 = vmatprep.subr.mxu0 0.0
          %393 = vmatpush1.msra.mxu0 0.0
          %394 = vmatprep.subr.mxu0 0.0
          %395 = vmatpush1.msra.mxu0 0.0
          %396 = vmatprep.mubr.f32.mxu0 0.0
          %397 = vmatmul.mubr.f32.gmra.mrb[0].mxu0 %v308
          %v398 = vpop.f32.mrb[0].mxu0
          %v399 = vadd.f32 %v330, %v398
          %v400 = vpop.f32.mrb[0].mxu0
          %401 = vdwg.mxu0
          %v402 = vmul.f32 %v399, 0.5
          %v403 = vmul.f32 %v399, 0.70710677
          %v404 = verf.f32.pop %v403
          %v405 = vadd.f32 %v404, 1.0
          %v406 = vmul.f32 %v402, %v405
          %407 = vadd.xlane.f32.xlu0 %v406
          %v408 = vpop.xlane.xlu0 %407
          %v409 = vmul.f32 %v408, 0.0078125
          %v410 = vmul.f32 %v406, %v406
          %411 = vadd.xlane.f32.xlu0 %v410
          %v412 = vpop.xlane.xlu0 %411
          %v413 = vmul.f32 %v412, 0.0078125
          %v414 = vmul.f32 %v409, %v409
          %v415 = vsub.f32 %v413, %v414
          %v416 = vmax.f32 %v415, 0.0
          %v417 = vsub.f32 %v406, %v409
          %v418 = vadd.f32 %v416, 1e-06
          %v419 = vrsqrt.pop %v418
          %v420 = vmul.f32 %v417, %v419
          %421 = vst [vmem:[#allocation2] sm:$0xff] %v420
        $region56: #{tpu_custom_call.1} parent=39 // pred_fallthru
          _
        %v422 = vld [vmem:[#allocation2] sm:$0xff]
        %v423 = vld [vmem:[#allocation8] sm:$0xff]
        %v424 = vld [vmem:[#allocation8 + $0x8] sm:$0xff]
        %v425 = vld [vmem:[#allocation8 + $0x10] sm:$0xff]
        %v426 = vld [vmem:[#allocation8 + $0x18] sm:$0xff]
        %v427 = vld [vmem:[#allocation8 + $0x20] sm:$0xff]
        %v428 = vld [vmem:[#allocation8 + $0x28] sm:$0xff]
        %v429 = vld [vmem:[#allocation8 + $0x30] sm:$0xff]
        %v430 = vld [vmem:[#allocation8 + $0x38] sm:$0xff]
        %v431 = vld [vmem:[#allocation8 + $0x40] sm:$0xff]
        %v432 = vld [vmem:[#allocation8 + $0x48] sm:$0xff]
        %v433 = vld [vmem:[#allocation8 + $0x50] sm:$0xff]
        %v434 = vld [vmem:[#allocation8 + $0x58] sm:$0xff]
        %v435 = vld [vmem:[#allocation8 + $0x60] sm:$0xff]
        %v436 = vld [vmem:[#allocation8 + $0x68] sm:$0xff]
        %v437 = vld [vmem:[#allocation8 + $0x70] sm:$0xff]
        %v438 = vld [vmem:[#allocation8 + $0x78] sm:$0xff]
        %v439 = vld [vmem:[%s303] sm:$0x1]
        %v441 = vlaneseq
        %v442 = vshrl.u32 %v441, 7
        %v443 = vsub.s32 0, %v442
        %v444 = vrot.slane %v439, %v443
        %446 = vmatprep.subr.mxu0 0.0
        %447 = vmatpush1.msra.mxu0 %v423
        %448 = vmatprep.subr.mxu0 0.0
        %449 = vmatpush1.msra.mxu0 %v424
        %450 = vmatprep.subr.mxu0 0.0
        %451 = vmatpush1.msra.mxu0 %v425
        %452 = vmatprep.subr.mxu0 0.0
        %453 = vmatpush1.msra.mxu0 %v426
        %454 = vmatprep.subr.mxu0 0.0
        %455 = vmatpush1.msra.mxu0 %v427
        %456 = vmatprep.subr.mxu0 0.0
        %457 = vmatpush1.msra.mxu0 %v428
        %458 = vmatprep.subr.mxu0 0.0
        %459 = vmatpush1.msra.mxu0 %v429
        %460 = vmatprep.subr.mxu0 0.0
        %461 = vmatpush1.msra.mxu0 %v430
        %462 = vmatprep.subr.mxu0 0.0
        %463 = vmatpush1.msra.mxu0 %v431
        %464 = vmatprep.subr.mxu0 0.0
        %465 = vmatpush1.msra.mxu0 %v432
        %466 = vmatprep.subr.mxu0 0.0
        %467 = vmatpush1.msra.mxu0 %v433
        %468 = vmatprep.subr.mxu0 0.0
        %469 = vmatpush1.msra.mxu0 %v434
        %470 = vmatprep.subr.mxu0 0.0
        %471 = vmatpush1.msra.mxu0 %v435
        %472 = vmatprep.subr.mxu0 0.0
        %473 = vmatpush1.msra.mxu0 %v436
        %474 = vmatprep.subr.mxu0 0.0
        %475 = vmatpush1.msra.mxu0 %v437
        %476 = vmatprep.subr.mxu0 0.0
        %477 = vmatpush1.msra.mxu0 %v438
        %478 = vmatprep.subr.mxu0 0.0
        %479 = vmatpush1.msra.mxu0 0.0
        %480 = vmatprep.subr.mxu0 0.0
        %481 = vmatpush1.msra.mxu0 0.0
        %482 = vmatprep.subr.mxu0 0.0
        %483 = vmatpush1.msra.mxu0 0.0
        %484 = vmatprep.subr.mxu0 0.0
        %485 = vmatpush1.msra.mxu0 0.0
        %486 = vmatprep.subr.mxu0 0.0
        %487 = vmatpush1.msra.mxu0 0.0
        %488 = vmatprep.subr.mxu0 0.0
        %489 = vmatpush1.msra.mxu0 0.0
        %490 = vmatprep.subr.mxu0 0.0
        %491 = vmatpush1.msra.mxu0 0.0
        %492 = vmatprep.subr.mxu0 0.0
        %493 = vmatpush1.msra.mxu0 0.0
        %494 = vmatprep.subr.mxu0 0.0
        %495 = vmatpush1.msra.mxu0 0.0
        %496 = vmatprep.subr.mxu0 0.0
        %497 = vmatpush1.msra.mxu0 0.0
        %498 = vmatprep.subr.mxu0 0.0
        %499 = vmatpush1.msra.mxu0 0.0
        %500 = vmatprep.subr.mxu0 0.0
        %501 = vmatpush1.msra.mxu0 0.0
        %502 = vmatprep.subr.mxu0 0.0
        %503 = vmatpush1.msra.mxu0 0.0
        %504 = vmatprep.subr.mxu0 0.0
        %505 = vmatpush1.msra.mxu0 0.0
        %506 = vmatprep.subr.mxu0 0.0
        %507 = vmatpush1.msra.mxu0 0.0
        %508 = vmatprep.subr.mxu0 0.0
        %509 = vmatpush1.msra.mxu0 0.0
        %510 = vmatprep.mubr.f32.mxu0 0.0
        %511 = vmatmul.mubr.f32.gmra.mrb[0].mxu0 %v422
        %v512 = vpop.f32.mrb[0].mxu0
        %v513 = vadd.f32 %v444, %v512
        %v514 = vpop.f32.mrb[0].mxu0
        %515 = vdwg.mxu0
        %516 = vst [vmem:[%s300] sm:$0xff] %v513
        %s517 = sand.u32 %s165, 1
        %s518 = scalar_lea.sflag [#allocation5], %s517
        %s519 = sand.u32 %s165, 1
        %s520 = smul.addr %s519, 8
        %s521 = scalar_lea.vmem [#allocation9], %s520
        // Predicated region
        $region57: #{tpu_custom_call.1} parent=39 // pred_check
          %p522 = pneg %p175
        $region58: #{tpu_custom_call.1} parent=39 // pred_check_branch
          %524 = sbr.rel (%p522) target = $region60
        $region59: #{tpu_custom_call.1} parent=39 // pred_region
          %s526 = ssub.s32 128, 128
          %527 = vsyncadd %s518, %s526
          %s528 = sadd.s32 %s28, %s27
          %s529 = smul.addr %s528, 128
          %s530 = scalar_lea.hbm %s5, %s529
          %s532 = sshll.u32 %s521, 4
          %s533 = int_to_ptr.vmem [resolvable:$true] %s532
          %535 = dma.vmem_to_hbm [thread:$0]  %s533, 128, %s530, %s518
        $region60: #{tpu_custom_call.1} parent=39 // pred_fallthru
          _
      $region40: #{tpu_custom_call.1} parent=5 // pred_fallthru
        _
      %p536 = scmp.le.s32.totalorder 2, %s18
      // Predicated region
      $region61: #{tpu_custom_call.1} parent=5 // pred_check
        %p537 = pneg %p536
      $region62: #{tpu_custom_call.1} parent=5 // pred_check_branch
        %539 = sbr.rel (%p537) target = $region64
      $region63: #{tpu_custom_call.1} parent=5 // pred_region
        %s540 = ssub.s32 %s18, 2
        // Predicated region
        $region65: #{tpu_custom_call.1} parent=63 // pred_check
          %p541 = pneg %p181
        $region66: #{tpu_custom_call.1} parent=63 // pred_check_branch
          %543 = sbr.rel (%p541) target = $region68
        $region67: #{tpu_custom_call.1} parent=63 // pred_region
          %s544 = sand.u32 %s166, 1
          %s545 = scalar_lea.sflag [#allocation5], %s544
          %s546 = sand.u32 %s166, 1
          %s547 = smul.addr %s546, 8
          %s548 = scalar_lea.vmem [#allocation9], %s547
          %549 = dma.done %s545, 128
        $region68: #{tpu_custom_call.1} parent=63 // pred_fallthru
          _
      $region64: #{tpu_custom_call.1} parent=5 // pred_fallthru
        _
    $region6: #{tpu_custom_call.1} parent=1 // loop_footer
      %s22 = sadd.s32 1, %s18
    $region7: #{tpu_custom_call.1} parent=1 // loop_footer_branch
      %17 = sbr.rel target = $region3
    $region8: #{tpu_custom_call.1} parent=1 // loop_exit
      _
    %550 = vsyncpa [#allocation4], 1
    %s551 = scalar_lea.sflag [#allocation4], 1
    %552 = vsyncpa %s551, 1
    %553 = vsyncpa [#allocation7], 1
    %554 = vsyncpa [#allocation5], 1
    %s555 = scalar_lea.sflag [#allocation5], 1
    %556 = vsyncpa %s555, 1

</llo_original>
